<compile_context>
chip_gen: v6e
topology: v6e:2x2x1
jax: 0.10.0
libtpu: 0.0.40
codegen_flags: <defaults>
</compile_context>

<pallas_src>
import functools
import math

import jax
import jax.numpy as jnp
from jax import lax
from jax.experimental import pallas as pl
from jax.experimental.pallas import tpu as pltpu

_EPS = 1e-8


# ----------------------------------------------------------------------------
# helpers
# ----------------------------------------------------------------------------
def _round_up(v, m):
    return ((v + m - 1) // m) * m


def _choose_tile(dim, unit, pref):
    """Return (tile, padded_dim).

    tile is a multiple of `unit`, divides padded_dim, and is <= pref when
    dim > pref.  Padding is kept minimal (<= ~12.5% slack) while preferring
    larger tiles.
    """
    if dim <= pref:
        t = _round_up(dim, unit)
        return t, t
    cands = []
    t = pref
    while t >= unit:
        cands.append((t, _round_up(dim, t)))
        t //= 2
    min_pad = min(p for _, p in cands)
    budget = min_pad + max(min_pad // 8, unit)
    ok = [tp for tp in cands if tp[1] <= budget]
    best_t, best_p = max(ok, key=lambda tp: tp[0])
    return best_t, best_p


def _matmul_vmem_bytes(tm, tn, tk, x_bytes):
    return (2 * tm * tk * x_bytes          # x tiles (double-buffered)
            + 2 * tn * tk                  # int8 W tiles (double-buffered)
            + 2 * tm * tn * x_bytes        # output tiles (double-buffered)
            + tm * tn * 4                  # f32 accumulator scratch
            + (tm * tk + tn * tk) * 4)     # in-kernel operand casts


# ----------------------------------------------------------------------------
# Kernel 1: absmean -> per-row-block partial sums of |W|
# ----------------------------------------------------------------------------
def _absmean_kernel(w_ref, part_ref, acc_ref):
    j = pl.program_id(1)

    @pl.when(j == 0)
    def _():
        acc_ref[...] = jnp.zeros_like(acc_ref)

    acc_ref[...] += jnp.sum(jnp.abs(w_ref[...].astype(jnp.float32)))

    @pl.when(j == pl.num_programs(1) - 1)
    def _():
        part_ref[0] = acc_ref[...]


def _absmean_partials(w_padded, *, bn, bk):
    np_, kp = w_padded.shape
    gi, gj = np_ // bn, kp // bk
    return pl.pallas_call(
        _absmean_kernel,
        out_shape=jax.ShapeDtypeStruct((gi, 1, 1), jnp.float32),
        grid_spec=pltpu.PrefetchScalarGridSpec(
            num_scalar_prefetch=0,
            grid=(gi, gj),
            in_specs=[pl.BlockSpec((bn, bk), lambda i, j: (i, j))],
            out_specs=pl.BlockSpec((1, 1, 1), lambda i, j: (i, 0, 0)),
            scratch_shapes=[pltpu.VMEM((1, 1), jnp.float32)],
        ),
        compiler_params=pltpu.CompilerParams(
            dimension_semantics=("parallel", "arbitrary")),
    )(w_padded)


# ----------------------------------------------------------------------------
# Kernel 2: one-shot ternary quantization W -> int8 {-1, 0, 1}
# ----------------------------------------------------------------------------
def _quantize_kernel(scale_ref, w_ref, q_ref):
    s = scale_ref[0, 0]
    w = w_ref[...].astype(jnp.float32)
    q = jnp.round(jnp.clip(w / (s + _EPS), -1.0, 1.0))   # matches reference exactly
    q_ref[...] = q.astype(jnp.int8)


def _quantize_weights(w_padded, scale, *, bn, bk):
    np_, kp = w_padded.shape
    return pl.pallas_call(
        _quantize_kernel,
        out_shape=jax.ShapeDtypeStruct((np_, kp), jnp.int8),
        grid_spec=pltpu.PrefetchScalarGridSpec(
            num_scalar_prefetch=0,
            grid=(np_ // bn, kp // bk),
            in_specs=[
                pl.BlockSpec(memory_space=pltpu.MemorySpace.SMEM),   # scale (1,1)
                pl.BlockSpec((bn, bk), lambda i, j: (i, j)),
            ],
            out_specs=pl.BlockSpec((bn, bk), lambda i, j: (i, j)),
        ),
        compiler_params=pltpu.CompilerParams(
            dimension_semantics=("parallel", "parallel")),
    )(scale, w_padded)


# ----------------------------------------------------------------------------
# Kernel 3: tiled matmul against pre-quantized int8 ternary weights
# ----------------------------------------------------------------------------
def _bitlinear_matmul_kernel(scale_ref, x_ref, wq_ref, o_ref, acc_ref, *, mxu_dtype):
    k_idx = pl.program_id(2)

    @pl.when(k_idx == 0)
    def _():
        acc_ref[...] = jnp.zeros_like(acc_ref)

    x_t = x_ref[...].astype(mxu_dtype)
    w_t = wq_ref[...].astype(mxu_dtype)   # {-1,0,1}: exact in bf16/f32
    # Contract K of (tm, tk) against K of (tn, tk): no transpose, output (tm, tn)
    # stays lane-dense on N.
    acc_ref[...] += lax.dot_general(
        x_t, w_t,
        dimension_numbers=(((1,), (1,)), ((), ())),
        preferred_element_type=jnp.float32,
    )

    @pl.when(k_idx == pl.num_programs(2) - 1)
    def _():
        o_ref[...] = (acc_ref[...] * scale_ref[0, 0]).astype(o_ref.dtype)


# ----------------------------------------------------------------------------
# Wrapper mirroring BitLinear.forward (bias is None in the module)
# ----------------------------------------------------------------------------
def bit_linear_forward(x, weight, *, tm_pref=512, tn_pref=512, tk_pref=1024,
                       use_bf16_matmul=False):
    """x: (..., in_features), weight: (out_features, in_features)."""
    lead = x.shape[:-1]
    k = x.shape[-1]
    n = weight.shape[0]
    x2d = x.reshape(-1, k)
    m = x2d.shape[0]

    tm, mp = _choose_tile(m, 8, tm_pref)
    tn, np_ = _choose_tile(n, 128, tn_pref)
    tk, kp = _choose_tile(k, 128, tk_pref)

    if (mp, kp) != (m, k):
        x2d = jnp.pad(x2d, ((0, mp - m), (0, kp - k)))
    w_p = weight if (np_, kp) == (n, k) else jnp.pad(weight, ((0, np_ - n), (0, kp - k)))

    # 1) scale = mean(|W|): zero padding contributes nothing; divide by true count.
    partials = _absmean_partials(w_p, bn=tn, bk=tk)
    scale = (jnp.sum(partials) / float(n * k)).reshape(1, 1).astype(jnp.float32)

    # 2) ternary int8 weight buffer (1 byte/element).
    w_q8 = _quantize_weights(w_p, scale, bn=tn, bk=tk)

    # 3) tiled matmul; scale applied once in the epilogue.
    mxu_dtype = jnp.bfloat16 if use_bf16_matmul else x2d.dtype
    kernel = functools.partial(_bitlinear_matmul_kernel, mxu_dtype=mxu_dtype)
    x_bytes = jnp.dtype(x2d.dtype).itemsize
    vmem_limit = int(min(64 << 20,
                         max(32 << 20, 2 * _matmul_vmem_bytes(tm, tn, tk, x_bytes))))
    y2d = pl.pallas_call(
        kernel,
        out_shape=jax.ShapeDtypeStruct((mp, np_), x2d.dtype),
        grid_spec=pltpu.PrefetchScalarGridSpec(
            num_scalar_prefetch=0,
            grid=(mp // tm, np_ // tn, kp // tk),
            in_specs=[
                pl.BlockSpec(memory_space=pltpu.MemorySpace.SMEM),     # scale (1,1)
                pl.BlockSpec((tm, tk), lambda i, j, kk: (i, kk)),      # activations
                pl.BlockSpec((tn, tk), lambda i, j, kk: (j, kk)),      # int8 weights
            ],
            out_specs=pl.BlockSpec((tm, tn), lambda i, j, kk: (i, j)),
            scratch_shapes=[pltpu.VMEM((tm, tn), jnp.float32)],
        ),
        compiler_params=pltpu.CompilerParams(
            dimension_semantics=("parallel", "parallel", "arbitrary"),
            vmem_limit_bytes=vmem_limit),
    )(scale, x2d, w_q8)

    return y2d[:m, :n].reshape(*lead, n)


def bit_linear_reference(x, weight):
    scale = jnp.mean(jnp.abs(weight))
    w_q = jnp.round(jnp.clip(weight / (scale + _EPS), -1.0, 1.0)) * scale
    return x @ w_q.T


if __name__ == "__main__":
    kx1, kw1, kx2, kw2 = jax.random.split(jax.random.PRNGKey(0), 4)

    # ---- Test 1: module-spec small shapes (batch=2, seq=8, in=32, out=64) ---
    batch, seq, in_f, out_f = 2, 8, 32, 64
    bound = 1.0 / math.sqrt(in_f)               # kaiming_uniform_(a=sqrt(5))
    w1 = jax.random.uniform(kw1, (out_f, in_f), jnp.float32,
                            minval=-bound, maxval=bound)
    x1 = jax.random.normal(kx1, (batch, seq, in_f), jnp.float32)

    y1 = jax.block_until_ready(bit_linear_forward(x1, w1))
    y1_ref = bit_linear_reference(x1, w1)
    assert y1.shape == (batch, seq, out_f)
    assert jnp.allclose(y1, y1_ref, atol=1e-4, rtol=1e-4), "test1: mismatch vs reference"

    # ---- Test 2: non-aligned shapes (padding + multi-step K/N tiling) -------
    b2, s2, in2, out2 = 1, 300, 640, 384
    bound2 = 1.0 / math.sqrt(in2)
    w2 = jax.random.uniform(kw2, (out2, in2), jnp.float32,
                            minval=-bound2, maxval=bound2)
    x2 = jax.random.normal(kx2, (b2, s2, in2), jnp.float32)

    y2 = jax.block_until_ready(bit_linear_forward(x2, w2))
    y2_ref = bit_linear_reference(x2, w2)
    assert y2.shape == (b2, s2, out2)
    assert jnp.allclose(y2, y2_ref, atol=5e-4, rtol=5e-4), "test2: mismatch vs reference"

    # ---- Test 3: bf16 MXU fast path (full MXU rate, relaxed tolerance) ------
    y2_fast = jax.block_until_ready(bit_linear_forward(x2, w2, use_bf16_matmul=True))
    rel = jnp.max(jnp.abs(y2_fast - y2_ref)) / (jnp.max(jnp.abs(y2_ref)) + 1e-6)
    assert rel < 5e-2, f"bf16 path relative error too high: {rel}"

    print("KERNEL_OK")
</pallas_src>

<mosaic_0001>
module attributes {stable_mosaic.version = 11 : i64} {
  func.func @_absmean_kernel(%arg0: i32, %arg1: i32, %arg2: memref<128x128xf32, #tpu.memory_space<vmem>>, %arg3: memref<1x1x1xf32, #tpu.memory_space<vmem>>, %arg4: memref<1x1xf32, #tpu.memory_space<vmem>>) attributes {dimension_semantics = [#tpu.dimension_semantics<parallel>, #tpu.dimension_semantics<arbitrary>], iteration_bounds = array<i64: 1, 1>, scalar_prefetch = 0 : i64, scratch_operands = 1 : i64, tpu.core_type = #tpu.core_type<tc>, window_params = [{transform_indices = @transform_0, window_bounds = array<i64: 128, 128>}, {transform_indices = @transform_1, window_bounds = array<i64: 1, 1, 1>}]} {
    %c0_i32 = arith.constant 0 : i32
    %0 = arith.cmpi eq, %arg1, %c0_i32 : i32
    %1 = arith.extui %0 : i1 to i32
    %c0_i32_0 = arith.constant 0 : i32
    %2 = arith.cmpi ne, %1, %c0_i32_0 : i32
    scf.if %2 {
      %cst_8 = arith.constant 0.000000e+00 : f32
      %16 = vector.broadcast %cst_8 : f32 to vector<1x1xf32>
      %c0_9 = arith.constant 0 : index
      %c0_10 = arith.constant 0 : index
      %17 = vector.load %arg4[%c0_9, %c0_10] : memref<1x1xf32, #tpu.memory_space<vmem>>, vector<1x1xf32>
      tpu.vector_store %arg4[%c0_9, %c0_10], %16 {strides = array<i32>} : memref<1x1xf32, #tpu.memory_space<vmem>>, vector<1x1xf32>,
    } else {
    }
    %c0 = arith.constant 0 : index
    %c0_1 = arith.constant 0 : index
    %3 = vector.load %arg4[%c0, %c0_1] : memref<1x1xf32, #tpu.memory_space<vmem>>, vector<1x1xf32>
    %c0_2 = arith.constant 0 : index
    %c0_3 = arith.constant 0 : index
    %4 = vector.load %arg2[%c0_2, %c0_3] : memref<128x128xf32, #tpu.memory_space<vmem>>, vector<128x128xf32>
    %5 = math.absf %4 : vector<128x128xf32>
    %6 = vector.shape_cast %5 : vector<128x128xf32> to vector<1x128x128xf32>
    %cst = arith.constant dense<0.000000e+00> : vector<1xf32>
    %7 = vector.multi_reduction <add>, %6, %cst [1, 2] : vector<1x128x128xf32> to vector<1xf32>
    %8 = vector.shape_cast %7 : vector<1xf32> to vector<1x1x1xf32>
    %9 = vector.extract %8[0, 0, 0] : f32 from vector<1x1x1xf32>
    %10 = vector.broadcast %9 : f32 to vector<1x1xf32>
    %11 = arith.addf %3, %10 : vector<1x1xf32>
    %c0_4 = arith.constant 0 : index
    %c0_5 = arith.constant 0 : index
    %12 = vector.load %arg4[%c0_4, %c0_5] : memref<1x1xf32, #tpu.memory_space<vmem>>, vector<1x1xf32>
    tpu.vector_store %arg4[%c0_4, %c0_5], %11 {strides = array<i32>} : memref<1x1xf32, #tpu.memory_space<vmem>>, vector<1x1xf32>,
    %c0_i32_6 = arith.constant 0 : i32
    %13 = arith.cmpi eq, %arg1, %c0_i32_6 : i32
    %14 = arith.extui %13 : i1 to i32
    %c0_i32_7 = arith.constant 0 : i32
    %15 = arith.cmpi ne, %14, %c0_i32_7 : i32
    scf.if %15 {
      %c0_8 = arith.constant 0 : index
      %c0_9 = arith.constant 0 : index
      %16 = vector.load %arg4[%c0_8, %c0_9] : memref<1x1xf32, #tpu.memory_space<vmem>>, vector<1x1xf32>
      %c0_10 = arith.constant 0 : index
      %c0_11 = arith.constant 0 : index
      %c0_12 = arith.constant 0 : index
      %17 = vector.load %arg3[%c0_10, %c0_11, %c0_12] : memref<1x1x1xf32, #tpu.memory_space<vmem>>, vector<1x1x1xf32>
      %18 = vector.shape_cast %17 : vector<1x1x1xf32> to vector<1x1xf32>
      %19 = vector.shape_cast %16 : vector<1x1xf32> to vector<1x1x1xf32>
      tpu.vector_store %arg3[%c0_10, %c0_11, %c0_12], %19 {strides = array<i32>} : memref<1x1x1xf32, #tpu.memory_space<vmem>>, vector<1x1x1xf32>,
    } else {
    }
    return
  }
  func.func @transform_0(%arg0: i32, %arg1: i32) -> (i32, i32) {
    %c0_i32 = arith.constant 0 : i32
    return %arg0, %arg1 : i32, i32
  }
  func.func @transform_1(%arg0: i32, %arg1: i32) -> (i32, i32, i32) {
    %c0_i32 = arith.constant 0 : i32
    %c0_i32_0 = arith.constant 0 : i32
    %c0_i32_1 = arith.constant 0 : i32
    return %arg0, %c0_i32, %c0_i32_0 : i32, i32, i32
  }
}

</mosaic_0001>

<llo_original>
// kernel: tpu_custom_call.1
$region0: #{tpu_custom_call.1}
  #allocation0 [shape = 'u32[]', space=smem, size = 0x4, offset = 0x4, fixed_abs, tag = 'smem constant byte address 0x4 - core index']
  #allocation1 [shape = 'u32[144,128]{1,0:T(1,128)}', space=vmem, size = 0x12000, scoped, tag = 'internal scratch']
  #allocation2 [shape = 'f32[1,1]{1,0:T(1,128)}', space=vmem, size = 0x200, scoped, tag = 'scratch operand']
  %s0 = inlined_call_operand.hbm [shape: f32[128,128], index: 0, kind: input, shape index: {}]
  %s1 = inlined_call_operand.hbm [shape: f32[1,1,1], index: 1, kind: output, shape index: {}]
  %s2 = sld [smem:[#allocation0]]
  $region26: #{tpu_custom_call.1} parent=0
    _
  %s4 = ssub.s32 1, %s2
  %s5 = scalar_select 0, %s4, %s2
  $region1: #{tpu_custom_call.1} parent=0
    #allocation3 [shape = 'u8[65536]{0}', space=vmem, size = 0x10000, scoped, tag = 'input window, operand 0, single buffered']
    #allocation4 [shape = 's32[1]{0}', space=sflag, size = 0x4, scoped, tag = 'scoped memory for tpu_custom_call.1']
    #allocation5 [shape = 's32[1]{0}', space=sflag, size = 0x4, scoped, tag = 'scoped memory for tpu_custom_call.1']
    #allocation6 [shape = 'u8[512]{0}', space=vmem, size = 0x400, scoped, tag = 'output window, operand 0, single buffered']
    %6 = vsyncpa [#allocation4], 0
    %7 = vsyncpa [#allocation5], 0
    // Predicated region
    $region2: #{tpu_custom_call.1} parent=1 // pred_check
      _
    $region3: #{tpu_custom_call.1} parent=1 // pred_check_branch
      %9 = sbr.rel (0) target = $region5
    $region4: #{tpu_custom_call.1} parent=1 // pred_region
      %s11 = ssub.s32 2048, 2048
      %12 = vsyncadd [#allocation4], %s11
      %s13 = sshll.u32 [#allocation3], 4
      %s14 = int_to_ptr.vmem [resolvable:$true] %s13
      %19 = dma.hbm_to_vmem [thread:$0]  %s0, 2048, %s14, [#allocation4], 128, 128, 8
    $region5: #{tpu_custom_call.1} parent=1 // pred_fallthru
      _
    // Predicated region
    $region6: #{tpu_custom_call.1} parent=1 // pred_check
      _
    $region7: #{tpu_custom_call.1} parent=1 // pred_check_branch
      %21 = sbr.rel (0) target = $region9
    $region8: #{tpu_custom_call.1} parent=1 // pred_region
      %22 = dma.done [#allocation4], 2048
    $region9: #{tpu_custom_call.1} parent=1 // pred_fallthru
      _
    %p23 = scmp.eq.s32.totalorder 0, 0
    // Predicated region
    $region10: #{tpu_custom_call.1} parent=1 // pred_check
      %p24 = pneg %p23
    $region11: #{tpu_custom_call.1} parent=1 // pred_check_branch
      %26 = sbr.rel (%p24) target = $region13
    $region12: #{tpu_custom_call.1} parent=1 // pred_region
      %vm27 = vcmask 0
      %28 = vst.msk [vmem:[#allocation2] sm:$0x1] %vm27, 0.0
    $region13: #{tpu_custom_call.1} parent=1 // pred_fallthru
      _
    %v29 = vld [vmem:[#allocation2] sm:$0x1]
    %v30 = vld [vmem:[#allocation3] sm:$0xff]
    %v31 = vld [vmem:[#allocation3 + $0x8] sm:$0xff]
    %v32 = vld [vmem:[#allocation3 + $0x10] sm:$0xff]
    %v33 = vld [vmem:[#allocation3 + $0x18] sm:$0xff]
    %v34 = vld [vmem:[#allocation3 + $0x20] sm:$0xff]
    %v35 = vld [vmem:[#allocation3 + $0x28] sm:$0xff]
    %v36 = vld [vmem:[#allocation3 + $0x30] sm:$0xff]
    %v37 = vld [vmem:[#allocation3 + $0x38] sm:$0xff]
    %v38 = vld [vmem:[#allocation3 + $0x40] sm:$0xff]
    %v39 = vld [vmem:[#allocation3 + $0x48] sm:$0xff]
    %v40 = vld [vmem:[#allocation3 + $0x50] sm:$0xff]
    %v41 = vld [vmem:[#allocation3 + $0x58] sm:$0xff]
    %v42 = vld [vmem:[#allocation3 + $0x60] sm:$0xff]
    %v43 = vld [vmem:[#allocation3 + $0x68] sm:$0xff]
    %v44 = vld [vmem:[#allocation3 + $0x70] sm:$0xff]
    %v45 = vld [vmem:[#allocation3 + $0x78] sm:$0xff]
    %v46 = vand.u32 2147483647, %v30
    %v47 = vand.u32 2147483647, %v31
    %v48 = vand.u32 2147483647, %v32
    %v49 = vand.u32 2147483647, %v33
    %v50 = vand.u32 2147483647, %v34
    %v51 = vand.u32 2147483647, %v35
    %v52 = vand.u32 2147483647, %v36
    %v53 = vand.u32 2147483647, %v37
    %v54 = vand.u32 2147483647, %v38
    %v55 = vand.u32 2147483647, %v39
    %v56 = vand.u32 2147483647, %v40
    %v57 = vand.u32 2147483647, %v41
    %v58 = vand.u32 2147483647, %v42
    %v59 = vand.u32 2147483647, %v43
    %v60 = vand.u32 2147483647, %v44
    %v61 = vand.u32 2147483647, %v45
    %v62 = vadd.f32 %v46, %v47
    %v63 = vadd.f32 %v62, %v48
    %v64 = vadd.f32 %v63, %v49
    %v65 = vadd.f32 %v64, %v50
    %v66 = vadd.f32 %v65, %v51
    %v67 = vadd.f32 %v66, %v52
    %v68 = vadd.f32 %v67, %v53
    %v69 = vadd.f32 %v68, %v54
    %v70 = vadd.f32 %v69, %v55
    %v71 = vadd.f32 %v70, %v56
    %v72 = vadd.f32 %v71, %v57
    %v73 = vadd.f32 %v72, %v58
    %v74 = vadd.f32 %v73, %v59
    %v75 = vadd.f32 %v74, %v60
    %v76 = vadd.f32 %v75, %v61
    %77 = vadd.xlane.f32.xlu0 %v76
    %v78 = vpop.xlane.xlu0 %77
    %v79 = vrot.slane %v78, 4
    %v80 = vadd.f32 %v78, %v79
    %v81 = vrot.slane %v80, 2
    %v82 = vadd.f32 %v80, %v81
    %v83 = vrot.slane %v82, 1
    %v84 = vadd.f32 %v82, %v83
    %s85 = vtos %v84
    %v86 = vstv %s85
    %v87 = vadd.f32 %v29, %v86
    %vm88 = vcmask 0
    %89 = vst.msk [vmem:[#allocation2] sm:$0x1] %vm88, %v87
    // Predicated region
    $region14: #{tpu_custom_call.1} parent=1 // pred_check
      %p90 = pneg %p23
    $region15: #{tpu_custom_call.1} parent=1 // pred_check_branch
      %92 = sbr.rel (%p90) target = $region17
    $region16: #{tpu_custom_call.1} parent=1 // pred_region
      %v93 = vld [vmem:[#allocation2] sm:$0x1]
      %94 = vst.msk [vmem:[#allocation6] sm:$0x1] %vm88, %v93
    $region17: #{tpu_custom_call.1} parent=1 // pred_fallthru
      _
    // Predicated region
    $region18: #{tpu_custom_call.1} parent=1 // pred_check
      _
    $region19: #{tpu_custom_call.1} parent=1 // pred_check_branch
      %96 = sbr.rel (0) target = $region21
    $region20: #{tpu_custom_call.1} parent=1 // pred_region
      %s98 = ssub.s32 16, 16
      %99 = vsyncadd [#allocation5], %s98
      %s101 = sshll.u32 [#allocation6], 4
      %s102 = int_to_ptr.vmem [resolvable:$true] %s101
      %104 = dma.vmem_to_hbm [thread:$0]  %s102, 16, %s1, [#allocation5]
    $region21: #{tpu_custom_call.1} parent=1 // pred_fallthru
      _
    // Predicated region
    $region22: #{tpu_custom_call.1} parent=1 // pred_check
      _
    $region23: #{tpu_custom_call.1} parent=1 // pred_check_branch
      %106 = sbr.rel (0) target = $region25
    $region24: #{tpu_custom_call.1} parent=1 // pred_region
      %107 = dma.done [#allocation5], 16
    $region25: #{tpu_custom_call.1} parent=1 // pred_fallthru
      _
    %108 = vsyncpa [#allocation4], 1
    %109 = vsyncpa [#allocation5], 1

</llo_original>
